<compile_context>
chip_gen: v7x
topology: tpu7x:2x2x1
jax: 0.10.0
libtpu: 0.0.40
codegen_flags: <defaults>
</compile_context>

<pallas_src>
import math
import functools

import jax
import jax.numpy as jnp
from jax.experimental import pallas as pl
from jax.experimental.pallas import tpu as pltpu


def _round_up(a: int, b: int) -> int:
    return ((a + b - 1) // b) * b


def _gru_gate_kernel(xh_ref, w_comb_ref, u_h_ref, bias_z_ref, out_ref):
    d = out_ref.shape[-1]

    xh32 = xh_ref[...]                       # (tm, 2*d) f32: [x | h]
    h32 = xh32[:, d:2 * d]                   # tile-aligned static slice
    xh = xh32.astype(jnp.bfloat16)

    # [x|h] @ [[W_r|W_z|W_h],[U_r|U_z|0]] -> (tm, 3*d), f32 accumulation.
    g = jnp.dot(xh, w_comb_ref[...], preferred_element_type=jnp.float32)

    # r = sigmoid(X W_r + h U_r)
    r = jax.nn.sigmoid(g[:, 0:d])
    # z = sigmoid(X W_z + h U_z - bias_z)
    z = jax.nn.sigmoid(g[:, d:2 * d] - bias_z_ref[...])
    # h_next = tanh(X W_h + (h*r) U_h)
    hr = (h32 * r).astype(jnp.bfloat16)
    h_next = jnp.tanh(g[:, 2 * d:3 * d]
                      + jnp.dot(hr, u_h_ref[...],
                                preferred_element_type=jnp.float32))

    out_ref[...] = ((1.0 - z) * h32 + z * h_next).astype(out_ref.dtype)


@functools.partial(jax.jit, static_argnames=("tm",))
def gru_gate_pallas(h, x, w_r, w_z, w_h, u_r, u_z, u_h, bias_z, *, tm=256):
    """h, x: [N, dim] float32. Returns [N, dim] float32."""
    N, dim = h.shape
    assert x.shape == (N, dim)

    # --- lane-dense feature padding (multiple of 128) ------------------------
    dim_p = _round_up(dim, 128)

    # Combined weight slab (2*dim_p, 3*dim_p), bf16 in HBM:
    #   rows [0, dim)        -> [W_r | W_z | W_h]
    #   rows [dim_p, dim_p+dim) -> [U_r | U_z |  0 ]
    wc = jnp.zeros((2 * dim_p, 3 * dim_p), jnp.float32)
    wc = wc.at[:dim, 0 * dim_p:0 * dim_p + dim].set(w_r)
    wc = wc.at[:dim, 1 * dim_p:1 * dim_p + dim].set(w_z)
    wc = wc.at[:dim, 2 * dim_p:2 * dim_p + dim].set(w_h)
    wc = wc.at[dim_p:dim_p + dim, 0 * dim_p:0 * dim_p + dim].set(u_r)
    wc = wc.at[dim_p:dim_p + dim, 1 * dim_p:1 * dim_p + dim].set(u_z)
    w_comb = wc.astype(jnp.bfloat16)

    u_h_p = (jnp.zeros((dim_p, dim_p), jnp.float32)
             .at[:dim, :dim].set(u_h).astype(jnp.bfloat16))
    bias_p = jnp.zeros((1, dim_p), jnp.float32).at[0, :dim].set(bias_z)

    # --- row tiling -----------------------------------------------------------
    N_pad8 = _round_up(N, 8)
    tm_eff = _round_up(min(tm, N_pad8), 8)
    # Keep >=2 steps on the "parallel" axis when possible (v7x has 2 TCs).
    if N_pad8 // tm_eff < 2 and N_pad8 >= 16:
        tm_eff = max(8, ((N_pad8 // 2) // 8) * 8)
    N_pad = _round_up(N, tm_eff)

    # Pack x and h lane-adjacent: [x | h] in one f32 slab.
    xh_p = (jnp.zeros((N_pad, 2 * dim_p), jnp.float32)
            .at[:N, :dim].set(x)
            .at[:N, dim_p:dim_p + dim].set(h))

    grid = (N_pad // tm_eff,)

    xh_spec = pl.BlockSpec((tm_eff, 2 * dim_p), lambda i: (i, 0))
    w_comb_spec = pl.BlockSpec((2 * dim_p, 3 * dim_p), lambda i: (0, 0))
    u_h_spec = pl.BlockSpec((dim_p, dim_p), lambda i: (0, 0))
    b_spec = pl.BlockSpec((1, dim_p), lambda i: (0, 0))
    out_spec = pl.BlockSpec((tm_eff, dim_p), lambda i: (i, 0))

    # --- VMEM budget (double-buffered f32 activations, bf16 weights) --------
    act_bytes = 2 * (2 * tm_eff * dim_p + tm_eff * dim_p) * 4   # xh + out tiles
    wgt_bytes = 2 * (7 * dim_p * dim_p) * 2                     # w_comb + u_h
    bias_bytes = 2 * dim_p * 4
    vmem_limit = int(min(64 * 1024 * 1024,
                         act_bytes + wgt_bytes + bias_bytes + (4 << 20)))

    cost = pl.CostEstimate(
        flops=14 * N_pad * dim_p * dim_p,          # fused dot + (h*r)@U_h
        transcendentals=3 * N_pad * dim_p,         # 2 sigmoid + 1 tanh
        bytes_accessed=(3 * N_pad * dim_p * 4      # xh in, out (f32)
                        + 7 * dim_p * dim_p * 2    # weights (bf16)
                        + dim_p * 4),              # bias
    )

    out_p = pl.pallas_call(
        _gru_gate_kernel,
        out_shape=jax.ShapeDtypeStruct((N_pad, dim_p), h.dtype),
        grid_spec=pltpu.PrefetchScalarGridSpec(
            num_scalar_prefetch=0,
            grid=grid,
            in_specs=[xh_spec,        # [x | h]
                      w_comb_spec,    # [[W_r|W_z|W_h],[U_r|U_z|0]]
                      u_h_spec,       # U_h
                      b_spec],        # bias_z
            out_specs=out_spec,
        ),
        compiler_params=pltpu.CompilerParams(
            dimension_semantics=("parallel",),
            vmem_limit_bytes=vmem_limit),
        cost_estimate=cost,
    )(xh_p, w_comb, u_h_p, bias_p)

    return out_p[:N, :dim]


def xavier_uniform(key, shape, dtype=jnp.float32):
    fan_in, fan_out = shape[0], shape[1]
    bound = math.sqrt(6.0 / (fan_in + fan_out))
    return jax.random.uniform(key, shape, dtype, minval=-bound, maxval=bound)


def gru_gate_reference(h, x, w_r, w_z, w_h, u_r, u_z, u_h, bias_z):
    r = jax.nn.sigmoid(x @ w_r + h @ u_r)
    z = jax.nn.sigmoid(x @ w_z + h @ u_z - bias_z)
    h_next = jnp.tanh(x @ w_h + (h * r) @ u_h)
    return (1.0 - z) * h + z * h_next


if __name__ == "__main__":
    dim = 32
    batch, seq = 2, 8
    init_bias = 2.0

    key = jax.random.PRNGKey(0)
    keys = jax.random.split(key, 8)

    # Deterministic parameter init (matches GRUGate.__init__ shapes / xavier).
    w_r = xavier_uniform(keys[0], (dim, dim))
    w_z = xavier_uniform(keys[1], (dim, dim))
    w_h = xavier_uniform(keys[2], (dim, dim))
    u_r = xavier_uniform(keys[3], (dim, dim))
    u_z = xavier_uniform(keys[4], (dim, dim))
    u_h = xavier_uniform(keys[5], (dim, dim))
    bias_z = jnp.full((dim,), init_bias, dtype=jnp.float32)

    # Inputs: (h, X) each [batch, seq, dim] -> flattened to [N, dim].
    h_in = jax.random.normal(keys[6], (batch, seq, dim), dtype=jnp.float32)
    x_in = jax.random.normal(keys[7], (batch, seq, dim), dtype=jnp.float32)

    N = batch * seq
    h_flat = h_in.reshape(N, dim)
    x_flat = x_in.reshape(N, dim)

    out = gru_gate_pallas(h_flat, x_flat, w_r, w_z, w_h, u_r, u_z, u_h, bias_z)
    out = jax.block_until_ready(out).reshape(batch, seq, dim)

    ref = gru_gate_reference(h_flat, x_flat, w_r, w_z, w_h, u_r, u_z, u_h,
                             bias_z).reshape(batch, seq, dim)

    # bf16 MXU operands with f32 accumulation -> expect ~1e-2-level agreement
    # with the pure-f32 reference (precision tradeoff, not a bug).
    assert jnp.allclose(out, ref, atol=5e-2, rtol=5e-2), "mismatch vs reference"
    print("KERNEL_OK")
</pallas_src>

<mosaic_0001>
module attributes {stable_mosaic.version = 11 : i64} {
  func.func @_gru_gate_kernel(%arg0: i32, %arg1: memref<8x256xf32, #tpu.memory_space<vmem>>, %arg2: memref<256x384xbf16, #tpu.memory_space<vmem>>, %arg3: memref<128x128xbf16, #tpu.memory_space<vmem>>, %arg4: memref<1x128xf32, #tpu.memory_space<vmem>>, %arg5: memref<8x128xf32, #tpu.memory_space<vmem>>) attributes {dimension_semantics = [#tpu.dimension_semantics<parallel>], iteration_bounds = array<i64: 2>, scalar_prefetch = 0 : i64, scratch_operands = 0 : i64, tpu.core_type = #tpu.core_type<tc>, window_params = [{transform_indices = @transform_0, window_bounds = array<i64: 8, 256>}, {pipeline_mode = #tpu.pipeline_mode<synchronous>, transform_indices = @transform_1, window_bounds = array<i64: 256, 384>}, {pipeline_mode = #tpu.pipeline_mode<synchronous>, transform_indices = @transform_2, window_bounds = array<i64: 128, 128>}, {pipeline_mode = #tpu.pipeline_mode<synchronous>, transform_indices = @transform_3, window_bounds = array<i64: 1, 128>}, {transform_indices = @transform_4, window_bounds = array<i64: 8, 128>}]} {
    %c0 = arith.constant 0 : index
    %c0_0 = arith.constant 0 : index
    %0 = vector.load %arg1[%c0, %c0_0] : memref<8x256xf32, #tpu.memory_space<vmem>>, vector<8x256xf32>
    %1 = vector.extract_strided_slice %0 {offsets = [0, 128], sizes = [8, 128], strides = [1, 1]} : vector<8x256xf32> to vector<8x128xf32>
    %2 = arith.truncf %0 : vector<8x256xf32> to vector<8x256xbf16>
    %c0_1 = arith.constant 0 : index
    %c0_2 = arith.constant 0 : index
    %3 = vector.load %arg2[%c0_1, %c0_2] : memref<256x384xbf16, #tpu.memory_space<vmem>>, vector<256x384xbf16>
    %cst = arith.constant dense<0.000000e+00> : vector<8x384xf32>
    %4 = tpu.matmul %2, %3, %cst {dimension_numbers = #tpu.dot_dimension_numbers<[1], [0], [0], [1], [0, 0, 1, 1], [], []>} : vector<8x256xbf16>, vector<256x384xbf16>, vector<8x384xf32> -> vector<8x384xf32>
    %5 = vector.extract_strided_slice %4 {offsets = [0, 0], sizes = [8, 128], strides = [1, 1]} : vector<8x384xf32> to vector<8x128xf32>
    %6 = arith.negf %5 : vector<8x128xf32>
    %7 = math.exp %6 : vector<8x128xf32>
    %cst_3 = arith.constant 1.000000e+00 : f32
    %8 = vector.broadcast %cst_3 : f32 to vector<8x128xf32>
    %9 = arith.addf %8, %7 : vector<8x128xf32>
    %10 = arith.divf %8, %9 : vector<8x128xf32>
    %11 = vector.extract_strided_slice %4 {offsets = [0, 128], sizes = [8, 128], strides = [1, 1]} : vector<8x384xf32> to vector<8x128xf32>
    %c0_4 = arith.constant 0 : index
    %c0_5 = arith.constant 0 : index
    %12 = vector.load %arg4[%c0_4, %c0_5] : memref<1x128xf32, #tpu.memory_space<vmem>>, vector<1x128xf32>
    %13 = vector.broadcast %12 : vector<1x128xf32> to vector<8x128xf32>
    %14 = arith.subf %11, %13 : vector<8x128xf32>
    %15 = arith.negf %14 : vector<8x128xf32>
    %16 = math.exp %15 : vector<8x128xf32>
    %cst_6 = arith.constant 1.000000e+00 : f32
    %17 = vector.broadcast %cst_6 : f32 to vector<8x128xf32>
    %18 = arith.addf %17, %16 : vector<8x128xf32>
    %19 = arith.divf %17, %18 : vector<8x128xf32>
    %20 = arith.mulf %1, %10 : vector<8x128xf32>
    %21 = arith.truncf %20 : vector<8x128xf32> to vector<8x128xbf16>
    %22 = vector.extract_strided_slice %4 {offsets = [0, 256], sizes = [8, 128], strides = [1, 1]} : vector<8x384xf32> to vector<8x128xf32>
    %c0_7 = arith.constant 0 : index
    %c0_8 = arith.constant 0 : index
    %23 = vector.load %arg3[%c0_7, %c0_8] : memref<128x128xbf16, #tpu.memory_space<vmem>>, vector<128x128xbf16>
    %cst_9 = arith.constant dense<0.000000e+00> : vector<8x128xf32>
    %24 = tpu.matmul %21, %23, %cst_9 {dimension_numbers = #tpu.dot_dimension_numbers<[1], [0], [0], [1], [0, 0, 1, 1], [], []>} : vector<8x128xbf16>, vector<128x128xbf16>, vector<8x128xf32> -> vector<8x128xf32>
    %25 = arith.addf %22, %24 : vector<8x128xf32>
    %26 = math.tanh %25 : vector<8x128xf32>
    %cst_10 = arith.constant 1.000000e+00 : f32
    %27 = vector.broadcast %cst_10 : f32 to vector<8x128xf32>
    %28 = arith.subf %27, %19 : vector<8x128xf32>
    %29 = arith.mulf %28, %1 : vector<8x128xf32>
    %30 = arith.mulf %19, %26 : vector<8x128xf32>
    %31 = arith.addf %29, %30 : vector<8x128xf32>
    %c0_11 = arith.constant 0 : index
    %c0_12 = arith.constant 0 : index
    %32 = vector.load %arg5[%c0_11, %c0_12] : memref<8x128xf32, #tpu.memory_space<vmem>>, vector<8x128xf32>
    tpu.vector_store %arg5[%c0_11, %c0_12], %31 {strides = array<i32>} : memref<8x128xf32, #tpu.memory_space<vmem>>, vector<8x128xf32>,
    return
  }
  func.func @transform_0(%arg0: i32) -> (i32, i32) {
    %c0_i32 = arith.constant 0 : i32
    %c0_i32_0 = arith.constant 0 : i32
    return %arg0, %c0_i32 : i32, i32
  }
  func.func @transform_1(%arg0: i32) -> (i32, i32) {
    %c0_i32 = arith.constant 0 : i32
    %c0_i32_0 = arith.constant 0 : i32
    %c0_i32_1 = arith.constant 0 : i32
    return %c0_i32, %c0_i32_0 : i32, i32
  }
  func.func @transform_2(%arg0: i32) -> (i32, i32) {
    %c0_i32 = arith.constant 0 : i32
    %c0_i32_0 = arith.constant 0 : i32
    %c0_i32_1 = arith.constant 0 : i32
    return %c0_i32, %c0_i32_0 : i32, i32
  }
  func.func @transform_3(%arg0: i32) -> (i32, i32) {
    %c0_i32 = arith.constant 0 : i32
    %c0_i32_0 = arith.constant 0 : i32
    %c0_i32_1 = arith.constant 0 : i32
    return %c0_i32, %c0_i32_0 : i32, i32
  }
  func.func @transform_4(%arg0: i32) -> (i32, i32) {
    %c0_i32 = arith.constant 0 : i32
    %c0_i32_0 = arith.constant 0 : i32
    return %arg0, %c0_i32 : i32, i32
  }
}

</mosaic_0001>

<llo_original>
// kernel: gru_gate_pallas.1
$region0: #{gru_gate_pallas.1}
  #allocation0 [shape = 'u32[]', space=smem, size = 0x4, offset = 0x4, fixed_abs, tag = 'smem constant byte address 0x4 - core index']
  #allocation1 [shape = 'u32[144,128]{1,0:T(1,128)}', space=vmem, size = 0x12000, scoped, tag = 'internal scratch']
  %s0 = inlined_call_operand.vmem [shape: f32[16,256], index: 0, kind: input, shape index: {}]
  %s1 = inlined_call_operand.vmem [shape: bf16[256,384], index: 1, kind: input, shape index: {}]
  %s2 = inlined_call_operand.vmem [shape: bf16[128,128], index: 2, kind: input, shape index: {}]
  %s3 = inlined_call_operand.vmem [shape: f32[1,128], index: 3, kind: input, shape index: {}]
  %s4 = inlined_call_operand.hbm [shape: f32[16,128], index: 4, kind: output, shape index: {}]
  %s5 = sld [smem:[#allocation0]]
  $region49: #{gru_gate_pallas.1} parent=0
    _
  %s7 = ssub.s32 1, %s5
  %s8 = scalar_select 0, %s7, %s5
  $region1: #{gru_gate_pallas.1} parent=0
    #allocation2 [shape = 'u8[8192]{0}', space=vmem, size = 0x2000, scoped, tag = 'output window, operand 0']
    #allocation3 [shape = 's32[2]{0}', space=sflag, size = 0x8, scoped, tag = 'scoped memory for gru_gate_pallas.1']
    %9 = vsyncpa [#allocation3], 0
    %s10 = scalar_lea.sflag [#allocation3], 1
    %11 = vsyncpa %s10, 0
    loop: start=0, step=1, limit=4
    $region2: #{gru_gate_pallas.1} parent=1 // loop_pre_header
      _
    $region3: #{gru_gate_pallas.1} parent=1 // loop_header
      %s13 = sphi 0, %s17
      %p14 = scmp.ge.s32.totalorder %s13, 4
      %s23 = sphi 0, %s25
      %s26 = sphi 0, %s23
      %s27 = sphi 0, %s26
      %s43 = sphi 0, %s27
      %s47 = sphi 0, %s47
      %s49 = sphi 0, %s47
      %s50 = sphi 0, %s49
      %s64 = sphi 0, %s50
      %s68 = sphi 0, %s68
      %s70 = sphi 0, %s68
      %s71 = sphi 0, %s70
      %s85 = sphi 0, %s71
      %s89 = sphi 0, %s89
      %s91 = sphi 0, %s89
      %s92 = sphi 0, %s91
      %s106 = sphi 0, %s92
      %s112 = sphi 0, %s114
      %s115 = sphi 0, %s112
      %s116 = sphi 0, %s115
      %s132 = sphi 0, %s116
    $region4: #{gru_gate_pallas.1} parent=1 // loop_header_branch
      %16 = sbr.rel (%p14) target = $region8
    $region5: #{gru_gate_pallas.1} parent=1 // loop_body
      %s18 = ssub.s32 %s13, 1
      %s19 = ssub.s32 %s13, 2
      %s20 = sadd.s32 %s13, 1
      %s21 = ssub.s32 %s13, %s20
      %p22 = scmp.eq.s32.totalorder %s21, 0
      %s24 = sadd.s32 %s23, 1
      %s25 = scalar_select %p22, %s23, %s24
      %p28 = pneg %p22
      %p29 = scmp.eq.s32.totalorder %s13, 1
      %p30 = por %p28, %p29
      %p31 = scmp.ne.s32.totalorder %s23, %s26
      %p32 = scmp.eq.s32.totalorder %s13, 0
      %p33 = por %p31, %p32
      %p34 = scmp.ne.s32.totalorder %s23, %s26
      %p35 = scmp.eq.s32.totalorder %s18, 1
      %p36 = por %p34, %p35
      %p37 = scmp.ne.s32.totalorder %s26, %s27
      %p38 = scmp.eq.s32.totalorder %s18, 0
      %p39 = por %p37, %p38
      %p40 = scmp.ne.s32.totalorder %s26, %s27
      %p41 = scmp.eq.s32.totalorder %s19, 1
      %p42 = por %p40, %p41
      %p44 = scmp.ne.s32.totalorder %s27, %s43
      %p45 = scmp.eq.s32.totalorder %s19, 0
      %p46 = por %p44, %p45
      %s48 = sadd.s32 %s47, 1
      %p51 = scmp.eq.s32.totalorder %s13, 1
      %p52 = scmp.ne.s32.totalorder %s47, %s49
      %p53 = scmp.eq.s32.totalorder %s13, 0
      %p54 = por %p52, %p53
      %p55 = scmp.ne.s32.totalorder %s47, %s49
      %p56 = scmp.eq.s32.totalorder %s18, 1
      %p57 = por %p55, %p56
      %p58 = scmp.ne.s32.totalorder %s49, %s50
      %p59 = scmp.eq.s32.totalorder %s18, 0
      %p60 = por %p58, %p59
      %p61 = scmp.ne.s32.totalorder %s49, %s50
      %p62 = scmp.eq.s32.totalorder %s19, 1
      %p63 = por %p61, %p62
      %p65 = scmp.ne.s32.totalorder %s50, %s64
      %p66 = scmp.eq.s32.totalorder %s19, 0
      %p67 = por %p65, %p66
      %s69 = sadd.s32 %s68, 1
      %p72 = scmp.eq.s32.totalorder %s13, 1
      %p73 = scmp.ne.s32.totalorder %s68, %s70
      %p74 = scmp.eq.s32.totalorder %s13, 0
      %p75 = por %p73, %p74
      %p76 = scmp.ne.s32.totalorder %s68, %s70
      %p77 = scmp.eq.s32.totalorder %s18, 1
      %p78 = por %p76, %p77
      %p79 = scmp.ne.s32.totalorder %s70, %s71
      %p80 = scmp.eq.s32.totalorder %s18, 0
      %p81 = por %p79, %p80
      %p82 = scmp.ne.s32.totalorder %s70, %s71
      %p83 = scmp.eq.s32.totalorder %s19, 1
      %p84 = por %p82, %p83
      %p86 = scmp.ne.s32.totalorder %s71, %s85
      %p87 = scmp.eq.s32.totalorder %s19, 0
      %p88 = por %p86, %p87
      %s90 = sadd.s32 %s89, 1
      %p93 = scmp.eq.s32.totalorder %s13, 1
      %p94 = scmp.ne.s32.totalorder %s89, %s91
      %p95 = scmp.eq.s32.totalorder %s13, 0
      %p96 = por %p94, %p95
      %p97 = scmp.ne.s32.totalorder %s89, %s91
      %p98 = scmp.eq.s32.totalorder %s18, 1
      %p99 = por %p97, %p98
      %p100 = scmp.ne.s32.totalorder %s91, %s92
      %p101 = scmp.eq.s32.totalorder %s18, 0
      %p102 = por %p100, %p101
      %p103 = scmp.ne.s32.totalorder %s91, %s92
      %p104 = scmp.eq.s32.totalorder %s19, 1
      %p105 = por %p103, %p104
      %p107 = scmp.ne.s32.totalorder %s92, %s106
      %p108 = scmp.eq.s32.totalorder %s19, 0
      %p109 = por %p107, %p108
      %s110 = ssub.s32 %s13, %s20
      %p111 = scmp.eq.s32.totalorder %s110, 0
      %s113 = sadd.s32 %s112, 1
      %s114 = scalar_select %p111, %s112, %s113
      %p117 = pneg %p111
      %p118 = scmp.eq.s32.totalorder %s13, 1
      %p119 = por %p117, %p118
      %p120 = scmp.ne.s32.totalorder %s112, %s115
      %p121 = scmp.eq.s32.totalorder %s13, 0
      %p122 = por %p120, %p121
      %p123 = scmp.ne.s32.totalorder %s112, %s115
      %p124 = scmp.eq.s32.totalorder %s18, 1
      %p125 = por %p123, %p124
      %p126 = scmp.ne.s32.totalorder %s115, %s116
      %p127 = scmp.eq.s32.totalorder %s18, 0
      %p128 = por %p126, %p127
      %p129 = scmp.ne.s32.totalorder %s115, %s116
      %p130 = scmp.eq.s32.totalorder %s19, 1
      %p131 = por %p129, %p130
      %p133 = scmp.ne.s32.totalorder %s116, %s132
      %p134 = scmp.eq.s32.totalorder %s19, 0
      %p135 = por %p133, %p134
      %p136 = scmp.le.s32.totalorder 1, %s13
      %p137 = scmp.lt.s32.totalorder %s13, 3
      %p138 = pnand %p136, %p137
      %p139 = pneg %p138
      // Predicated region
      $region9: #{gru_gate_pallas.1} parent=5 // pred_check
        _
      $region10: #{gru_gate_pallas.1} parent=5 // pred_check_branch
        %141 = sbr.rel (%p138) target = $region12
      $region11: #{gru_gate_pallas.1} parent=5 // pred_region
        %s142 = ssub.s32 %s13, 1
        // Predicated region
        $region13: #{gru_gate_pallas.1} parent=11 // pred_check
          %p143 = pneg %p60
        $region14: #{gru_gate_pallas.1} parent=11 // pred_check_branch
          %145 = sbr.rel (%p143) target = $region16
        $region15: #{gru_gate_pallas.1} parent=11 // pred_region
          _
        $region16: #{gru_gate_pallas.1} parent=11 // pred_fallthru
          _
        // Predicated region
        $region17: #{gru_gate_pallas.1} parent=11 // pred_check
          %p146 = pneg %p81
        $region18: #{gru_gate_pallas.1} parent=11 // pred_check_branch
          %148 = sbr.rel (%p146) target = $region20
        $region19: #{gru_gate_pallas.1} parent=11 // pred_region
          _
        $region20: #{gru_gate_pallas.1} parent=11 // pred_fallthru
          _
        // Predicated region
        $region21: #{gru_gate_pallas.1} parent=11 // pred_check
          %p149 = pneg %p102
        $region22: #{gru_gate_pallas.1} parent=11 // pred_check_branch
          %151 = sbr.rel (%p149) target = $region24
        $region23: #{gru_gate_pallas.1} parent=11 // pred_region
          _
        $region24: #{gru_gate_pallas.1} parent=11 // pred_fallthru
          _
      $region12: #{gru_gate_pallas.1} parent=5 // pred_fallthru
        _
      %p152 = scmp.lt.s32.totalorder %s13, 2
      // Predicated region
      $region25: #{gru_gate_pallas.1} parent=5 // pred_check
        %p153 = pneg %p152
      $region26: #{gru_gate_pallas.1} parent=5 // pred_check_branch
        %155 = sbr.rel (%p153) target = $region28
      $region27: #{gru_gate_pallas.1} parent=5 // pred_region
        // Predicated region
        $region29: #{gru_gate_pallas.1} parent=27 // pred_check
          %p156 = pneg %p33
        $region30: #{gru_gate_pallas.1} parent=27 // pred_check_branch
          %158 = sbr.rel (%p156) target = $region32
        $region31: #{gru_gate_pallas.1} parent=27 // pred_region
          %p159 = scmp.lt.s32.totalorder %s13, 1
          %s160 = scalar_select %p159, %s13, 1
          %s161 = smul.addr %s160, 2
          %s162 = smul.addr %s161, 8
          %s163 = scalar_lea.vmem %s0, %s162
        $region32: #{gru_gate_pallas.1} parent=27 // pred_fallthru
          _
      $region28: #{gru_gate_pallas.1} parent=5 // pred_fallthru
        _
      %p164 = scmp.le.s32.totalorder 1, %s13
      %p165 = scmp.lt.s32.totalorder %s13, 3
      %p166 = pnand %p164, %p165
      %p167 = pneg %p166
      // Predicated region
      $region33: #{gru_gate_pallas.1} parent=5 // pred_check
        _
      $region34: #{gru_gate_pallas.1} parent=5 // pred_check_branch
        %169 = sbr.rel (%p166) target = $region36
      $region35: #{gru_gate_pallas.1} parent=5 // pred_region
        %s170 = ssub.s32 %s13, 1
        %p171 = scmp.lt.s32.totalorder %s18, 1
        %s172 = scalar_select %p171, %s18, 1
        %s173 = smul.addr %s172, 2
        %s174 = smul.addr %s173, 8
        %s175 = scalar_lea.vmem %s0, %s174
        %p176 = pneg %p39
        %p177 = pneg %p36
        %p178 = pneg %p60
        %p179 = pneg %p57
        %p180 = pneg %p81
        %p181 = pneg %p78
        %p182 = pneg %p102
        %p183 = pneg %p99
        %p184 = pneg %p128
        %p185 = pneg %p125
        %s186 = sand.u32 %s115, 1
        %s187 = scalar_lea.sflag [#allocation3], %s186
        %s188 = sand.u32 %s115, 1
        %s189 = smul.addr %s188, 8
        %s190 = scalar_lea.vmem [#allocation2], %s189
        %p191 = scmp.lt.s32.totalorder %s18, 1
        %s192 = scalar_select %p191, %s18, 1
        %s193 = smul.addr %s192, 2
        %s194 = smul.addr %s193, 8
        %s195 = scalar_lea.vmem %s0, %s194
        %v197 = vld [vmem:[%s195] sm:$0xff]
        %v198 = vld [vmem:[%s195 + $0x8] sm:$0xff]
        %v199 = vpack.c.bf16 %v197, %v197
        %v200 = vpack.c.bf16 %v198, %v198
        %v201 = vld [vmem:[%s1] sm:$0xff]
        %v202 = vld [vmem:[%s1 + $0x8] sm:$0xf]
        %v203 = vld [vmem:[%s1 + $0xc] sm:$0xff]
        %v204 = vld [vmem:[%s1 + $0x14] sm:$0xf]
        %v205 = vld [vmem:[%s1 + $0x18] sm:$0xff]
        %v206 = vld [vmem:[%s1 + $0x20] sm:$0xf]
        %v207 = vld [vmem:[%s1 + $0x24] sm:$0xff]
        %v208 = vld [vmem:[%s1 + $0x2c] sm:$0xf]
        %v209 = vld [vmem:[%s1 + $0x30] sm:$0xff]
        %v210 = vld [vmem:[%s1 + $0x38] sm:$0xf]
        %v211 = vld [vmem:[%s1 + $0x3c] sm:$0xff]
        %v212 = vld [vmem:[%s1 + $0x44] sm:$0xf]
        %v213 = vld [vmem:[%s1 + $0x48] sm:$0xff]
        %v214 = vld [vmem:[%s1 + $0x50] sm:$0xf]
        %v215 = vld [vmem:[%s1 + $0x54] sm:$0xff]
        %v216 = vld [vmem:[%s1 + $0x5c] sm:$0xf]
        %v217 = vld [vmem:[%s1 + $0x60] sm:$0xff]
        %v218 = vld [vmem:[%s1 + $0x68] sm:$0xf]
        %v219 = vld [vmem:[%s1 + $0x6c] sm:$0xff]
        %v220 = vld [vmem:[%s1 + $0x74] sm:$0xf]
        %v221 = vld [vmem:[%s1 + $0x78] sm:$0xff]
        %v222 = vld [vmem:[%s1 + $0x80] sm:$0xf]
        %v223 = vld [vmem:[%s1 + $0x84] sm:$0xff]
        %v224 = vld [vmem:[%s1 + $0x8c] sm:$0xf]
        %v225 = vld [vmem:[%s1 + $0x90] sm:$0xff]
        %v226 = vld [vmem:[%s1 + $0x98] sm:$0xf]
        %v227 = vld [vmem:[%s1 + $0x9c] sm:$0xff]
        %v228 = vld [vmem:[%s1 + $0xa4] sm:$0xf]
        %v229 = vld [vmem:[%s1 + $0xa8] sm:$0xff]
        %v230 = vld [vmem:[%s1 + $0xb0] sm:$0xf]
        %v231 = vld [vmem:[%s1 + $0xb4] sm:$0xff]
        %v232 = vld [vmem:[%s1 + $0xbc] sm:$0xf]
        %v233 = vld [vmem:[%s1 + $0xc0] sm:$0xff]
        %v234 = vld [vmem:[%s1 + $0xc8] sm:$0xf]
        %v235 = vld [vmem:[%s1 + $0xcc] sm:$0xff]
        %v236 = vld [vmem:[%s1 + $0xd4] sm:$0xf]
        %v237 = vld [vmem:[%s1 + $0xd8] sm:$0xff]
        %v238 = vld [vmem:[%s1 + $0xe0] sm:$0xf]
        %v239 = vld [vmem:[%s1 + $0xe4] sm:$0xff]
        %v240 = vld [vmem:[%s1 + $0xec] sm:$0xf]
        %v241 = vld [vmem:[%s1 + $0xf0] sm:$0xff]
        %v242 = vld [vmem:[%s1 + $0xf8] sm:$0xf]
        %v243 = vld [vmem:[%s1 + $0xfc] sm:$0xff]
        %v244 = vld [vmem:[%s1 + $0x104] sm:$0xf]
        %v245 = vld [vmem:[%s1 + $0x108] sm:$0xff]
        %v246 = vld [vmem:[%s1 + $0x110] sm:$0xf]
        %v247 = vld [vmem:[%s1 + $0x114] sm:$0xff]
        %v248 = vld [vmem:[%s1 + $0x11c] sm:$0xf]
        %v249 = vld [vmem:[%s1 + $0x120] sm:$0xff]
        %v250 = vld [vmem:[%s1 + $0x128] sm:$0xf]
        %v251 = vld [vmem:[%s1 + $0x12c] sm:$0xff]
        %v252 = vld [vmem:[%s1 + $0x134] sm:$0xf]
        %v253 = vld [vmem:[%s1 + $0x138] sm:$0xff]
        %v254 = vld [vmem:[%s1 + $0x140] sm:$0xf]
        %v255 = vld [vmem:[%s1 + $0x144] sm:$0xff]
        %v256 = vld [vmem:[%s1 + $0x14c] sm:$0xf]
        %v257 = vld [vmem:[%s1 + $0x150] sm:$0xff]
        %v258 = vld [vmem:[%s1 + $0x158] sm:$0xf]
        %v259 = vld [vmem:[%s1 + $0x15c] sm:$0xff]
        %v260 = vld [vmem:[%s1 + $0x164] sm:$0xf]
        %v261 = vld [vmem:[%s1 + $0x168] sm:$0xff]
        %v262 = vld [vmem:[%s1 + $0x170] sm:$0xf]
        %v263 = vld [vmem:[%s1 + $0x174] sm:$0xff]
        %v264 = vld [vmem:[%s1 + $0x17c] sm:$0xf]
        %v329 = vunpack.c.l.b16 %v201
        %v330 = vunpack.c.h.b16 %v201
        %v331 = vunpack.c.l.b16 %v202
        %v332 = vunpack.c.l.b16 %v203
        %v333 = vunpack.c.h.b16 %v203
        %v334 = vunpack.c.l.b16 %v204
        %v335 = vunpack.c.l.b16 %v205
        %v336 = vunpack.c.h.b16 %v205
        %v337 = vunpack.c.l.b16 %v206
        %v338 = vunpack.c.l.b16 %v207
        %v339 = vunpack.c.h.b16 %v207
        %v340 = vunpack.c.l.b16 %v208
        %v341 = vunpack.c.l.b16 %v209
        %v342 = vunpack.c.h.b16 %v209
        %v343 = vunpack.c.l.b16 %v210
        %v344 = vunpack.c.l.b16 %v211
        %v345 = vunpack.c.h.b16 %v211
        %v346 = vunpack.c.l.b16 %v212
        %v347 = vunpack.c.l.b16 %v213
        %v348 = vunpack.c.h.b16 %v213
        %v349 = vunpack.c.l.b16 %v214
        %v350 = vunpack.c.l.b16 %v215
        %v351 = vunpack.c.h.b16 %v215
        %v352 = vunpack.c.l.b16 %v216
        %v353 = vunpack.c.l.b16 %v217
        %v354 = vunpack.c.h.b16 %v217
        %v355 = vunpack.c.l.b16 %v218
        %v356 = vunpack.c.l.b16 %v219
        %v357 = vunpack.c.h.b16 %v219
        %v358 = vunpack.c.l.b16 %v220
        %v359 = vunpack.c.l.b16 %v221
        %v360 = vunpack.c.h.b16 %v221
        %v361 = vunpack.c.l.b16 %v222
        %v362 = vunpack.c.l.b16 %v223
        %v363 = vunpack.c.h.b16 %v223
        %v364 = vunpack.c.l.b16 %v224
        %v365 = vunpack.c.l.b16 %v225
        %v366 = vunpack.c.h.b16 %v225
        %v367 = vunpack.c.l.b16 %v226
        %v368 = vunpack.c.l.b16 %v227
        %v369 = vunpack.c.h.b16 %v227
        %v370 = vunpack.c.l.b16 %v228
        %v371 = vunpack.c.l.b16 %v229
        %v372 = vunpack.c.h.b16 %v229
        %v373 = vunpack.c.l.b16 %v230
        %v374 = vunpack.c.l.b16 %v231
        %v375 = vunpack.c.h.b16 %v231
        %v376 = vunpack.c.l.b16 %v232
        %v377 = vunpack.c.l.b16 %v233
        %v378 = vunpack.c.h.b16 %v233
        %v379 = vunpack.c.l.b16 %v234
        %v380 = vunpack.c.l.b16 %v235
        %v381 = vunpack.c.h.b16 %v235
        %v382 = vunpack.c.l.b16 %v236
        %v383 = vunpack.c.l.b16 %v237
        %v384 = vunpack.c.h.b16 %v237
        %v385 = vunpack.c.l.b16 %v238
        %v386 = vunpack.c.l.b16 %v239
        %v387 = vunpack.c.h.b16 %v239
        %v388 = vunpack.c.l.b16 %v240
        %v389 = vunpack.c.l.b16 %v241
        %v390 = vunpack.c.h.b16 %v241
        %v391 = vunpack.c.l.b16 %v242
        %v392 = vunpack.c.l.b16 %v243
        %v393 = vunpack.c.h.b16 %v243
        %v394 = vunpack.c.l.b16 %v244
        %v395 = vunpack.c.l.b16 %v245
        %v396 = vunpack.c.h.b16 %v245
        %v397 = vunpack.c.l.b16 %v246
        %v398 = vunpack.c.l.b16 %v247
        %v399 = vunpack.c.h.b16 %v247
        %v400 = vunpack.c.l.b16 %v248
        %v401 = vunpack.c.l.b16 %v249
        %v402 = vunpack.c.h.b16 %v249
        %v403 = vunpack.c.l.b16 %v250
        %v404 = vunpack.c.l.b16 %v251
        %v405 = vunpack.c.h.b16 %v251
        %v406 = vunpack.c.l.b16 %v252
        %v407 = vunpack.c.l.b16 %v253
        %v408 = vunpack.c.h.b16 %v253
        %v409 = vunpack.c.l.b16 %v254
        %v410 = vunpack.c.l.b16 %v255
        %v411 = vunpack.c.h.b16 %v255
        %v412 = vunpack.c.l.b16 %v256
        %v413 = vunpack.c.l.b16 %v257
        %v414 = vunpack.c.h.b16 %v257
        %v415 = vunpack.c.l.b16 %v258
        %v416 = vunpack.c.l.b16 %v259
        %v417 = vunpack.c.h.b16 %v259
        %v418 = vunpack.c.l.b16 %v260
        %v419 = vunpack.c.l.b16 %v261
        %v420 = vunpack.c.h.b16 %v261
        %v421 = vunpack.c.l.b16 %v262
        %v422 = vunpack.c.l.b16 %v263
        %v423 = vunpack.c.h.b16 %v263
        %v424 = vunpack.c.l.b16 %v264
        %v425 = vpack.c.b16 %v332, %v329
        %v426 = vpack.c.b16 %v333, %v330
        %v427 = vpack.c.b16 %v334, %v331
        %v428 = vpack.c.b16 %v338, %v335
        %v429 = vpack.c.b16 %v339, %v336
        %v430 = vpack.c.b16 %v340, %v337
        %v431 = vpack.c.b16 %v344, %v341
        %v432 = vpack.c.b16 %v345, %v342
        %v433 = vpack.c.b16 %v346, %v343
        %v434 = vpack.c.b16 %v350, %v347
        %v435 = vpack.c.b16 %v351, %v348
        %v436 = vpack.c.b16 %v352, %v349
        %v437 = vpack.c.b16 %v356, %v353
        %v438 = vpack.c.b16 %v357, %v354
        %v439 = vpack.c.b16 %v358, %v355
        %v440 = vpack.c.b16 %v362, %v359
        %v441 = vpack.c.b16 %v363, %v360
        %v442 = vpack.c.b16 %v364, %v361
        %v443 = vpack.c.b16 %v368, %v365
        %v444 = vpack.c.b16 %v369, %v366
        %v445 = vpack.c.b16 %v370, %v367
        %v446 = vpack.c.b16 %v374, %v371
        %v447 = vpack.c.b16 %v375, %v372
        %v448 = vpack.c.b16 %v376, %v373
        %v449 = vpack.c.b16 %v380, %v377
        %v450 = vpack.c.b16 %v381, %v378
        %v451 = vpack.c.b16 %v382, %v379
        %v452 = vpack.c.b16 %v386, %v383
        %v453 = vpack.c.b16 %v387, %v384
        %v454 = vpack.c.b16 %v388, %v385
        %v455 = vpack.c.b16 %v392, %v389
        %v456 = vpack.c.b16 %v393, %v390
        %v457 = vpack.c.b16 %v394, %v391
        %v458 = vpack.c.b16 %v398, %v395
        %v459 = vpack.c.b16 %v399, %v396
        %v460 = vpack.c.b16 %v400, %v397
        %v461 = vpack.c.b16 %v404, %v401
        %v462 = vpack.c.b16 %v405, %v402
        %v463 = vpack.c.b16 %v406, %v403
        %v464 = vpack.c.b16 %v410, %v407
        %v465 = vpack.c.b16 %v411, %v408
        %v466 = vpack.c.b16 %v412, %v409
        %v467 = vpack.c.b16 %v416, %v413
        %v468 = vpack.c.b16 %v417, %v414
        %v469 = vpack.c.b16 %v418, %v415
        %v470 = vpack.c.b16 %v422, %v419
        %v471 = vpack.c.b16 %v423, %v420
        %v472 = vpack.c.b16 %v424, %v421
        %521 = vmatprep.subr.bf16.mxu0 %v426
        %522 = vmatpush1.bf16.msra.mxu0 %v425
        %523 = vmatprep.subr.bf16.mxu0 %v429
        %524 = vmatpush1.bf16.msra.mxu0 %v428
        %525 = vmatprep.subr.bf16.mxu0 %v432
        %526 = vmatpush1.bf16.msra.mxu0 %v431
        %527 = vmatprep.subr.bf16.mxu0 %v435
        %528 = vmatpush1.bf16.msra.mxu0 %v434
        %529 = vmatprep.subr.bf16.mxu0 %v438
        %530 = vmatpush1.bf16.msra.mxu0 %v437
        %531 = vmatprep.subr.bf16.mxu0 %v441
        %532 = vmatpush1.bf16.msra.mxu0 %v440
        %533 = vmatprep.subr.bf16.mxu0 %v444
        %534 = vmatpush1.bf16.msra.mxu0 %v443
        %535 = vmatprep.subr.bf16.mxu0 %v447
        %536 = vmatpush1.bf16.msra.mxu0 %v446
        %537 = vmatprep.subr.bf16.mxu0 %v450
        %538 = vmatpush1.bf16.msra.mxu0 %v449
        %539 = vmatprep.subr.bf16.mxu0 %v453
        %540 = vmatpush1.bf16.msra.mxu0 %v452
        %541 = vmatprep.subr.bf16.mxu0 %v456
        %542 = vmatpush1.bf16.msra.mxu0 %v455
        %543 = vmatprep.subr.bf16.mxu0 %v459
        %544 = vmatpush1.bf16.msra.mxu0 %v458
        %545 = vmatprep.subr.bf16.mxu0 %v462
        %546 = vmatpush1.bf16.msra.mxu0 %v461
        %547 = vmatprep.subr.bf16.mxu0 %v465
        %548 = vmatpush1.bf16.msra.mxu0 %v464
        %549 = vmatprep.subr.bf16.mxu0 %v468
        %550 = vmatpush1.bf16.msra.mxu0 %v467
        %551 = vmatprep.subr.bf16.mxu0 %v471
        %552 = vmatpush1.bf16.msra.mxu0 %v470
        %553 = vmatprep.mubr.bf16.mxu0 %v200
        %554 = vmatmul.mubr.bf16.gmra.mrb[0].mxu0 %v199
        %v555 = vpop.f32.mrb[0].mxu0
        %v556 = vadd.f32 0.0, %v555
        %v557 = vpop.f32.mrb[0].mxu0
        %v558 = vadd.f32 0.0, %v557
        %v559 = vpop.f32.mrb[0].mxu0
        %v560 = vpop.f32.mrb[0].mxu0
        %561 = vdwg.mxu0
        %562 = vmatprep.subr.bf16.mxu0 0
        %563 = vmatpush1.bf16.msra.mxu0 %v427
        %564 = vmatprep.subr.bf16.mxu0 0
        %565 = vmatpush1.bf16.msra.mxu0 %v430
        %566 = vmatprep.subr.bf16.mxu0 0
        %567 = vmatpush1.bf16.msra.mxu0 %v433
        %568 = vmatprep.subr.bf16.mxu0 0
        %569 = vmatpush1.bf16.msra.mxu0 %v436
        %570 = vmatprep.subr.bf16.mxu0 0
        %571 = vmatpush1.bf16.msra.mxu0 %v439
        %572 = vmatprep.subr.bf16.mxu0 0
        %573 = vmatpush1.bf16.msra.mxu0 %v442
        %574 = vmatprep.subr.bf16.mxu0 0
        %575 = vmatpush1.bf16.msra.mxu0 %v445
        %576 = vmatprep.subr.bf16.mxu0 0
        %577 = vmatpush1.bf16.msra.mxu0 %v448
        %578 = vmatprep.subr.bf16.mxu0 0
        %579 = vmatpush1.bf16.msra.mxu0 %v451
        %580 = vmatprep.subr.bf16.mxu0 0
        %581 = vmatpush1.bf16.msra.mxu0 %v454
        %582 = vmatprep.subr.bf16.mxu0 0
        %583 = vmatpush1.bf16.msra.mxu0 %v457
        %584 = vmatprep.subr.bf16.mxu0 0
        %585 = vmatpush1.bf16.msra.mxu0 %v460
        %586 = vmatprep.subr.bf16.mxu0 0
        %587 = vmatpush1.bf16.msra.mxu0 %v463
        %588 = vmatprep.subr.bf16.mxu0 0
        %589 = vmatpush1.bf16.msra.mxu0 %v466
        %590 = vmatprep.subr.bf16.mxu0 0
        %591 = vmatpush1.bf16.msra.mxu0 %v469
        %592 = vmatprep.subr.bf16.mxu0 0
        %593 = vmatpush1.bf16.msra.mxu0 %v472
        %594 = vmatprep.mubr.bf16.mxu0 %v200
        %595 = vmatmul.mubr.bf16.gmra.mrb[0].mxu0 %v199
        %v596 = vpop.f32.mrb[0].mxu0
        %v597 = vadd.f32 0.0, %v596
        %v598 = vpop.f32.mrb[0].mxu0
        %v599 = vpop.f32.mrb[0].mxu0
        %v600 = vpop.f32.mrb[0].mxu0
        %601 = vdwg.mxu0
        %v602 = vxor.u32 %v556, 2147483648
        %v603 = vmul.f32 %v602, 1.442695
        %v604 = vpow.pop %v603
        %v605 = vadd.f32 %v604, 1.0
        %v606 = vrcp.pop %v605
        %v607 = vmul.f32 1.0, %v606
        %v608 = vld [vmem:[%s3] sm:$0x1]
        %v610 = vlaneseq
        %v611 = vshrl.u32 %v610, 7
        %v612 = vsub.s32 0, %v611
        %v613 = vrot.slane %v608, %v612
        %v615 = vsub.f32 %v558, %v613
        %v616 = vxor.u32 %v615, 2147483648
        %v617 = vmul.f32 %v616, 1.442695
        %v618 = vpow.pop %v617
        %v619 = vadd.f32 %v618, 1.0
        %v620 = vrcp.pop %v619
        %v621 = vmul.f32 1.0, %v620
        %v622 = vmul.f32 %v198, %v607
        %v623 = vpack.c.bf16 %v622, %v622
        %v624 = vld [vmem:[%s2] sm:$0xf]
        %v625 = vld [vmem:[%s2 + $0x4] sm:$0xf]
        %v626 = vld [vmem:[%s2 + $0x8] sm:$0xf]
        %v627 = vld [vmem:[%s2 + $0xc] sm:$0xf]
        %v628 = vld [vmem:[%s2 + $0x10] sm:$0xf]
        %v629 = vld [vmem:[%s2 + $0x14] sm:$0xf]
        %v630 = vld [vmem:[%s2 + $0x18] sm:$0xf]
        %v631 = vld [vmem:[%s2 + $0x1c] sm:$0xf]
        %v632 = vld [vmem:[%s2 + $0x20] sm:$0xf]
        %v633 = vld [vmem:[%s2 + $0x24] sm:$0xf]
        %v634 = vld [vmem:[%s2 + $0x28] sm:$0xf]
        %v635 = vld [vmem:[%s2 + $0x2c] sm:$0xf]
        %v636 = vld [vmem:[%s2 + $0x30] sm:$0xf]
        %v637 = vld [vmem:[%s2 + $0x34] sm:$0xf]
        %v638 = vld [vmem:[%s2 + $0x38] sm:$0xf]
        %v639 = vld [vmem:[%s2 + $0x3c] sm:$0xf]
        %v656 = vunpack.c.l.b16 %v624
        %v657 = vunpack.c.l.b16 %v625
        %v658 = vunpack.c.l.b16 %v626
        %v659 = vunpack.c.l.b16 %v627
        %v660 = vunpack.c.l.b16 %v628
        %v661 = vunpack.c.l.b16 %v629
        %v662 = vunpack.c.l.b16 %v630
        %v663 = vunpack.c.l.b16 %v631
        %v664 = vunpack.c.l.b16 %v632
        %v665 = vunpack.c.l.b16 %v633
        %v666 = vunpack.c.l.b16 %v634
        %v667 = vunpack.c.l.b16 %v635
        %v668 = vunpack.c.l.b16 %v636
        %v669 = vunpack.c.l.b16 %v637
        %v670 = vunpack.c.l.b16 %v638
        %v671 = vunpack.c.l.b16 %v639
        %v672 = vpack.c.b16 %v657, %v656
        %v673 = vpack.c.b16 %v659, %v658
        %v674 = vpack.c.b16 %v661, %v660
        %v675 = vpack.c.b16 %v663, %v662
        %v676 = vpack.c.b16 %v665, %v664
        %v677 = vpack.c.b16 %v667, %v666
        %v678 = vpack.c.b16 %v669, %v668
        %v679 = vpack.c.b16 %v671, %v670
        %688 = vmatprep.subr.bf16.mxu0 0
        %689 = vmatpush1.bf16.msra.mxu0 %v672
        %690 = vmatprep.subr.bf16.mxu0 0
        %691 = vmatpush1.bf16.msra.mxu0 %v673
        %692 = vmatprep.subr.bf16.mxu0 0
        %693 = vmatpush1.bf16.msra.mxu0 %v674
        %694 = vmatprep.subr.bf16.mxu0 0
        %695 = vmatpush1.bf16.msra.mxu0 %v675
        %696 = vmatprep.subr.bf16.mxu0 0
        %697 = vmatpush1.bf16.msra.mxu0 %v676
        %698 = vmatprep.subr.bf16.mxu0 0
        %699 = vmatpush1.bf16.msra.mxu0 %v677
        %700 = vmatprep.subr.bf16.mxu0 0
        %701 = vmatpush1.bf16.msra.mxu0 %v678
        %702 = vmatprep.subr.bf16.mxu0 0
        %703 = vmatpush1.bf16.msra.mxu0 %v679
        %704 = vmatprep.subr.bf16.mxu0 0
        %705 = vmatpush1.bf16.msra.mxu0 0
        %706 = vmatprep.subr.bf16.mxu0 0
        %707 = vmatpush1.bf16.msra.mxu0 0
        %708 = vmatprep.subr.bf16.mxu0 0
        %709 = vmatpush1.bf16.msra.mxu0 0
        %710 = vmatprep.subr.bf16.mxu0 0
        %711 = vmatpush1.bf16.msra.mxu0 0
        %712 = vmatprep.subr.bf16.mxu0 0
        %713 = vmatpush1.bf16.msra.mxu0 0
        %714 = vmatprep.subr.bf16.mxu0 0
        %715 = vmatpush1.bf16.msra.mxu0 0
        %716 = vmatprep.subr.bf16.mxu0 0
        %717 = vmatpush1.bf16.msra.mxu0 0
        %718 = vmatprep.subr.bf16.mxu0 0
        %719 = vmatpush1.bf16.msra.mxu0 0
        %720 = vmatprep.mubr.bf16.mxu0 0
        %721 = vmatmul.mubr.bf16.gmra.mrb[0].mxu0 %v623
        %v722 = vpop.f32.mrb[0].mxu0
        %v723 = vadd.f32 0.0, %v722
        %v724 = vpop.f32.mrb[0].mxu0
        %v725 = vpop.f32.mrb[0].mxu0
        %v726 = vpop.f32.mrb[0].mxu0
        %727 = vdwg.mxu0
        %v728 = vadd.f32 %v597, %v723
        %v729 = vtanh.pop %v728
        %v730 = vsub.f32 1.0, %v621
        %v731 = vmul.f32 %v730, %v198
        %v732 = vmul.f32 %v621, %v729
        %v733 = vadd.f32 %v731, %v732
        %734 = vst [vmem:[%s190] sm:$0xff] %v733
        %s735 = sand.u32 %s115, 1
        %s736 = scalar_lea.sflag [#allocation3], %s735
        %s737 = sand.u32 %s115, 1
        %s738 = smul.addr %s737, 8
        %s739 = scalar_lea.vmem [#allocation2], %s738
        // Predicated region
        $region37: #{gru_gate_pallas.1} parent=35 // pred_check
          %p740 = pneg %p125
        $region38: #{gru_gate_pallas.1} parent=35 // pred_check_branch
          %742 = sbr.rel (%p740) target = $region40
        $region39: #{gru_gate_pallas.1} parent=35 // pred_region
          %s744 = ssub.s32 128, 128
          %745 = vsyncadd %s736, %s744
          %s746 = smul.addr %s18, 128
          %s747 = scalar_lea.hbm %s4, %s746
          %s749 = sshll.u32 %s739, 4
          %s750 = int_to_ptr.vmem [resolvable:$true] %s749
          %752 = dma.vmem_to_hbm [thread:$0]  %s750, 128, %s747, %s736
        $region40: #{gru_gate_pallas.1} parent=35 // pred_fallthru
          _
      $region36: #{gru_gate_pallas.1} parent=5 // pred_fallthru
        _
      %p753 = scmp.le.s32.totalorder 2, %s13
      // Predicated region
      $region41: #{gru_gate_pallas.1} parent=5 // pred_check
        %p754 = pneg %p753
      $region42: #{gru_gate_pallas.1} parent=5 // pred_check_branch
        %756 = sbr.rel (%p754) target = $region44
      $region43: #{gru_gate_pallas.1} parent=5 // pred_region
        %s757 = ssub.s32 %s13, 2
        // Predicated region
        $region45: #{gru_gate_pallas.1} parent=43 // pred_check
          %p758 = pneg %p131
        $region46: #{gru_gate_pallas.1} parent=43 // pred_check_branch
          %760 = sbr.rel (%p758) target = $region48
        $region47: #{gru_gate_pallas.1} parent=43 // pred_region
          %s761 = sand.u32 %s116, 1
          %s762 = scalar_lea.sflag [#allocation3], %s761
          %s763 = sand.u32 %s116, 1
          %s764 = smul.addr %s763, 8
          %s765 = scalar_lea.vmem [#allocation2], %s764
          %766 = dma.done %s762, 128
        $region48: #{gru_gate_pallas.1} parent=43 // pred_fallthru
          _
      $region44: #{gru_gate_pallas.1} parent=5 // pred_fallthru
        _
    $region6: #{gru_gate_pallas.1} parent=1 // loop_footer
      %s17 = sadd.s32 1, %s13
    $region7: #{gru_gate_pallas.1} parent=1 // loop_footer_branch
      %12 = sbr.rel target = $region3
    $region8: #{gru_gate_pallas.1} parent=1 // loop_exit
      _
    %767 = vsyncpa [#allocation3], 1
    %s768 = scalar_lea.sflag [#allocation3], 1
    %769 = vsyncpa %s768, 1

</llo_original>
